<compile_context>
chip_gen: v7x
topology: tpu7x:2x2x1
jax: 0.10.0
libtpu: 0.0.40
codegen_flags: <defaults>
</compile_context>

<pallas_src>
import functools

import jax
import jax.numpy as jnp
from jax import lax
from jax.experimental import pallas as pl
from jax.experimental.pallas import tpu as pltpu


def _round_up(x, m):
    return ((x + m - 1) // m) * m


# ----------------------------- Pallas kernel ------------------------------ #

def _rtf_conv_kernel(i_map_ref, j_map_ref,            # scalar prefetch (SMEM)
                     kT_ref, uprev_ref, ucur_ref,     # inputs (VMEM tiles)
                     y_ref,                           # output (VMEM tile)
                     win_ref, *acc_scratch,           # scratch
                     tq, nj, unroll):
    """One (channel-tile, causal (i, j) pair) grid step.

    kT_ref:    (tq, DC)   kernel rows of lag tile j  (lag s = j*tq + t)
    uprev_ref: (tq, DC)   u time block (i - j - 1)   (zero block when j == i)
    ucur_ref:  (tq, DC)   u time block (i - j)
    y_ref:     (tq, DC)   output time tile i (resident across the j pairs)
    win_ref:   (2*tq, DC) f32 staging of [prev | cur] for shifted-window loads
    acc_scratch: optional (tq, DC) f32 accumulator (when output is not f32)
    """
    p = pl.program_id(1)
    i = i_map_ref[p]            # output time-tile index
    j = j_map_ref[p]            # lag-tile index, 0 <= j <= min(i, nj-1)
    acc_ref = acc_scratch[0] if acc_scratch else y_ref

    @pl.when(j == 0)
    def _init():
        acc_ref[...] = jnp.zeros_like(acc_ref)

    # Stage the shifted-window source once per step (single upcast to f32).
    win_ref[0:tq, :] = uprev_ref[...].astype(jnp.float32)
    win_ref[tq:2 * tq, :] = ucur_ref[...].astype(jnp.float32)

    def body(t, acc):
        # u_win[q, c] = u[i*tq + q - (j*tq + t), c]   (zeros for negative time)
        u_win = win_ref[pl.ds(tq - t, tq), :]
        # single-row kernel load; the multiply broadcasts across sublanes.
        k_row = kT_ref[pl.ds(t, 1), :]
        return acc + u_win * k_row

    acc = lax.fori_loop(0, tq, body, acc_ref[...].astype(jnp.float32),
                        unroll=unroll)
    acc_ref[...] = acc.astype(acc_ref.dtype)

    if acc_scratch:
        @pl.when(j == jnp.minimum(i, nj - 1))
        def _finalize():
            y_ref[...] = acc.astype(y_ref.dtype)


def causal_conv(k, u):
    """y[b,t,d] = sum_{s=0}^{min(t, lk-1)} k[d,s] * u[b,t-s,d]  via Pallas."""
    B, L, D = u.shape
    lk = k.shape[-1]

    DC = 128                                 # lane (channel) tile
    TQ = min(128, _round_up(L, 8))           # time tile (sublanes); lag tile == TQ

    C = B * D
    C_pad = _round_up(C, DC)
    L_pad = _round_up(L, TQ)
    LK_pad = _round_up(lk, TQ)
    nc, ni, nj = C_pad // DC, L_pad // TQ, LK_pad // TQ

    # Flattened causal schedule: only (i, j) pairs with j <= i (and j < nj).
    pairs = [(i, j) for i in range(ni) for j in range(min(i + 1, nj))]
    n_pairs = len(pairs)
    i_map = jnp.asarray([p[0] for p in pairs], jnp.int32)
    j_map = jnp.asarray([p[1] for p in pairs], jnp.int32)

    # Lane-dense staging: fold batch into the lane axis (c = b*D + d), time on
    # sublanes; one TQ-row zero block in front so the diagonal lag tile (j == i)
    # reads zeros for negative time.
    u_lc = jnp.transpose(u, (1, 0, 2)).reshape(L, C)
    upad = jnp.zeros((TQ + L_pad, C_pad), u.dtype)
    upad = upad.at[TQ:TQ + L, :C].set(u_lc)

    # TODO(synk): k is replicated across batch in HBM; if D >= 128 the batch
    # could be a squeezed grid axis indexing k by d only.
    kT = jnp.tile(jnp.asarray(k, jnp.float32).T, (1, B))        # (lk, B*D)
    kT_pad = jnp.zeros((LK_pad, C_pad), jnp.float32)
    kT_pad = kT_pad.at[:lk, :C].set(kT)

    acc_in_out = (u.dtype == jnp.float32)    # accumulate directly into y_ref
    unroll = TQ if TQ <= 16 else 4

    kernel = functools.partial(_rtf_conv_kernel, tq=TQ, nj=nj, unroll=unroll)

    itemsize = jnp.dtype(u.dtype).itemsize
    cost = pl.CostEstimate(
        flops=2 * nc * n_pairs * TQ * TQ * DC,
        transcendentals=0,
        bytes_accessed=nc * n_pairs * (TQ * DC * 4 + 2 * TQ * DC * itemsize)
        + L_pad * C_pad * itemsize)

    scratch = [pltpu.VMEM((2 * TQ, DC), jnp.float32)]
    if not acc_in_out:
        scratch.append(pltpu.VMEM((TQ, DC), jnp.float32))

    grid_spec = pltpu.PrefetchScalarGridSpec(
        num_scalar_prefetch=2,
        grid=(nc, n_pairs),
        in_specs=[
            # kernel lag tile j
            pl.BlockSpec((TQ, DC), lambda c, p, im, jm: (jm[p], c)),
            # previous u time block (padded coords: block 0 is the zero pad)
            pl.BlockSpec((TQ, DC), lambda c, p, im, jm: (im[p] - jm[p], c)),
            # current u time block
            pl.BlockSpec((TQ, DC), lambda c, p, im, jm: (im[p] - jm[p] + 1, c)),
        ],
        out_specs=pl.BlockSpec((TQ, DC), lambda c, p, im, jm: (im[p], c)),
        scratch_shapes=scratch,
    )

    y_lc = pl.pallas_call(
        kernel,
        out_shape=jax.ShapeDtypeStruct((L_pad, C_pad), u.dtype),
        grid_spec=grid_spec,
        compiler_params=pltpu.CompilerParams(
            dimension_semantics=("parallel", "arbitrary"),
            vmem_limit_bytes=32 * 1024 * 1024),
        cost_estimate=cost,
    )(i_map, j_map, kT_pad, upad, upad)

    return y_lc[:L, :C].reshape(L, B, D).transpose(1, 0, 2)


# --------------------------- RTF glue (plain JAX) -------------------------- #

def rtf_get_k(ab, h_0, *, D, N, L_trunc, num_a, l):
    """RTF kernel generation (impulse response of b(z)/a(z) + h_0 * delta)."""
    # TODO(synk): rfft/irfft kernel generation has no Pallas TPU equivalent;
    # it is O(D * L log L) glue and stays in plain JAX (XLA FFT).
    assert l <= L_trunc
    pad_right = L_trunc - N - 1 + (L_trunc % 2)
    ab_p = jnp.pad(ab, ((0, 0), (1, pad_right)))            # (D+num_a, L+L%2)
    ab_p = ab_p.at[:num_a, 0].set(1.0)                      # monic denominator
    AB = jnp.fft.rfft(ab_p, axis=-1)
    A = AB[:num_a]                                          # (num_a, F)
    Bnum = AB[num_a:]                                       # (D, F)
    A_rep = jnp.repeat(A, D // num_a, axis=0)               # 'D N -> (D R) N'
    K = Bnum / A_rep + h_0[:, None]
    k = jnp.fft.irfft(K, axis=-1)[:, :l]                    # (D, l)
    return k.astype(jnp.float32)


def rtf_forward(params, u):
    """u: (B, L, D) -> y: (B, L, D). Matches RTF.forward (causal branch)."""
    B, l, D = u.shape
    k = rtf_get_k(params["ab"], params["h_0"],
                  D=D, N=params["N"], L_trunc=params["L"],
                  num_a=params["num_a"], l=l)
    return causal_conv(k, u)


def _fft_conv_reference(k, u):
    """Pure-JAX replica of the PyTorch FFT path, for verification."""
    B, l, D = u.shape
    n = 2 * l - l % 2
    K = jnp.fft.rfft(k, n=n, axis=-1)          # (D, F)
    U = jnp.fft.rfft(u, n=n, axis=1)           # (B, F, D)
    Y = K.T[None, :, :] * U
    y = jnp.fft.irfft(Y, n=n, axis=1)[:, :l]
    return y.astype(jnp.float32)


# ----------------------------------- main ---------------------------------- #

if __name__ == "__main__":
    # Primary test: shapes consistent with the module (d_model=32, state_size=4,
    # trunc_len=16 > state_size, batch=2, seq_len=8).
    D, N, L_trunc, num_a = 32, 4, 16, 32
    B, l = 2, 8

    key = jax.random.PRNGKey(0)
    k_ab, k_h0, k_u, k_k2, k_u2 = jax.random.split(key, 5)

    # Parameter shapes from RTF.__init__ (non-bidirectional):
    #   ab : ((D + num_a), N), h_0 : (D,)
    ab = 0.05 * jax.random.normal(k_ab, (D + num_a, N), jnp.float32)
    h_0 = jax.random.normal(k_h0, (D,), jnp.float32)
    params = {"ab": ab, "h_0": h_0, "N": N, "L": L_trunc, "num_a": num_a}

    u = jax.random.normal(k_u, (B, l, D), jnp.float32)

    y = jax.block_until_ready(rtf_forward(params, u))

    k_ref = rtf_get_k(ab, h_0, D=D, N=N, L_trunc=L_trunc, num_a=num_a, l=l)
    y_ref = _fft_conv_reference(k_ref, u)
    assert y.shape == (B, l, D)
    assert jnp.allclose(y, y_ref, atol=1e-4, rtol=1e-4), (
        "primary mismatch, max abs err = "
        f"{float(jnp.max(jnp.abs(y - y_ref)))}")

    # Secondary test: multiple time/lag tiles, diagonal + off-diagonal pairs,
    # L not a multiple of the tile, padded channel lanes (C = 48 < 128).
    B2, L2, D2 = 2, 160, 24
    k2 = jax.random.normal(k_k2, (D2, L2), jnp.float32) / jnp.sqrt(float(L2))
    u2 = jax.random.normal(k_u2, (B2, L2, D2), jnp.float32)
    y2 = jax.block_until_ready(causal_conv(k2, u2))
    y2_ref = _fft_conv_reference(k2, u2)
    assert jnp.allclose(y2, y2_ref, atol=1e-3, rtol=1e-3), (
        "secondary mismatch, max abs err = "
        f"{float(jnp.max(jnp.abs(y2 - y2_ref)))}")

    print("KERNEL_OK")
</pallas_src>

<mosaic_0001>
module attributes {stable_mosaic.version = 11 : i64} {
  func.func @_rtf_conv_kernel(%arg0: i32, %arg1: i32, %arg2: memref<1xi32, #tpu.memory_space<smem>>, %arg3: memref<1xi32, #tpu.memory_space<smem>>, %arg4: memref<8x128xf32, #tpu.memory_space<vmem>>, %arg5: memref<8x128xf32, #tpu.memory_space<vmem>>, %arg6: memref<8x128xf32, #tpu.memory_space<vmem>>, %arg7: memref<8x128xf32, #tpu.memory_space<vmem>>, %arg8: memref<16x128xf32, #tpu.memory_space<vmem>>) attributes {dimension_semantics = [#tpu.dimension_semantics<parallel>, #tpu.dimension_semantics<arbitrary>], iteration_bounds = array<i64: 1, 1>, scalar_prefetch = 2 : i64, scratch_operands = 1 : i64, tpu.core_type = #tpu.core_type<tc>, window_params = [{transform_indices = @transform_0, window_bounds = array<i64: 8, 128>}, {transform_indices = @transform_1, window_bounds = array<i64: 8, 128>}, {transform_indices = @transform_2, window_bounds = array<i64: 8, 128>}, {transform_indices = @transform_3, window_bounds = array<i64: 8, 128>}]} {
    %0 = arith.index_cast %arg1 : i32 to index
    %1 = memref.load %arg3[%0] : memref<1xi32, #tpu.memory_space<smem>>
    %c0_i32 = arith.constant 0 : i32
    %2 = arith.cmpi eq, %1, %c0_i32 : i32
    %3 = arith.extui %2 : i1 to i32
    %c0_i32_0 = arith.constant 0 : i32
    %4 = arith.cmpi ne, %3, %c0_i32_0 : i32
    scf.if %4 {
      %cst = arith.constant 0.000000e+00 : f32
      %75 = vector.broadcast %cst : f32 to vector<8x128xf32>
      %c0_36 = arith.constant 0 : index
      %c0_37 = arith.constant 0 : index
      %76 = vector.load %arg7[%c0_36, %c0_37] : memref<8x128xf32, #tpu.memory_space<vmem>>, vector<8x128xf32>
      tpu.vector_store %arg7[%c0_36, %c0_37], %75 {strides = array<i32>} : memref<8x128xf32, #tpu.memory_space<vmem>>, vector<8x128xf32>,
    } else {
    }
    %c0 = arith.constant 0 : index
    %c0_1 = arith.constant 0 : index
    %5 = vector.load %arg5[%c0, %c0_1] : memref<8x128xf32, #tpu.memory_space<vmem>>, vector<8x128xf32>
    %c0_2 = arith.constant 0 : index
    %c0_3 = arith.constant 0 : index
    %6 = vector.load %arg8[%c0_2, %c0_3] : memref<16x128xf32, #tpu.memory_space<vmem>>, vector<8x128xf32>
    tpu.vector_store %arg8[%c0_2, %c0_3], %5 {strides = array<i32>} : memref<16x128xf32, #tpu.memory_space<vmem>>, vector<8x128xf32>,
    %c0_4 = arith.constant 0 : index
    %c0_5 = arith.constant 0 : index
    %7 = vector.load %arg6[%c0_4, %c0_5] : memref<8x128xf32, #tpu.memory_space<vmem>>, vector<8x128xf32>
    %c8 = arith.constant 8 : index
    %c0_6 = arith.constant 0 : index
    %8 = vector.load %arg8[%c8, %c0_6] : memref<16x128xf32, #tpu.memory_space<vmem>>, vector<8x128xf32>
    tpu.vector_store %arg8[%c8, %c0_6], %7 {strides = array<i32>} : memref<16x128xf32, #tpu.memory_space<vmem>>, vector<8x128xf32>,
    %c0_7 = arith.constant 0 : index
    %c0_8 = arith.constant 0 : index
    %9 = vector.load %arg7[%c0_7, %c0_8] : memref<8x128xf32, #tpu.memory_space<vmem>>, vector<8x128xf32>
    %c0_i32_9 = arith.constant 0 : i32
    %c8_i32 = arith.constant 8 : i32
    %10 = arith.subi %c8_i32, %c0_i32_9 : i32
    %11 = arith.index_cast %10 : i32 to index
    %c0_10 = arith.constant 0 : index
    %12 = vector.load %arg8[%11, %c0_10] : memref<16x128xf32, #tpu.memory_space<vmem>>, vector<8x128xf32>
    %13 = arith.index_cast %c0_i32_9 : i32 to index
    %c0_11 = arith.constant 0 : index
    %14 = vector.load %arg4[%13, %c0_11] : memref<8x128xf32, #tpu.memory_space<vmem>>, vector<1x128xf32>
    %15 = vector.broadcast %14 : vector<1x128xf32> to vector<8x128xf32>
    %16 = arith.mulf %12, %15 : vector<8x128xf32>
    %17 = arith.addf %9, %16 : vector<8x128xf32>
    %c1_i32 = arith.constant 1 : i32
    %c8_i32_12 = arith.constant 8 : i32
    %18 = arith.subi %c8_i32_12, %c1_i32 : i32
    %19 = arith.index_cast %18 : i32 to index
    %c0_13 = arith.constant 0 : index
    %20 = vector.load %arg8[%19, %c0_13] : memref<16x128xf32, #tpu.memory_space<vmem>>, vector<8x128xf32>
    %21 = arith.index_cast %c1_i32 : i32 to index
    %c0_14 = arith.constant 0 : index
    %22 = vector.load %arg4[%21, %c0_14] : memref<8x128xf32, #tpu.memory_space<vmem>>, vector<1x128xf32>
    %23 = vector.broadcast %22 : vector<1x128xf32> to vector<8x128xf32>
    %24 = arith.mulf %20, %23 : vector<8x128xf32>
    %25 = arith.addf %17, %24 : vector<8x128xf32>
    %c2_i32 = arith.constant 2 : i32
    %c8_i32_15 = arith.constant 8 : i32
    %26 = arith.subi %c8_i32_15, %c2_i32 : i32
    %27 = arith.index_cast %26 : i32 to index
    %c0_16 = arith.constant 0 : index
    %28 = vector.load %arg8[%27, %c0_16] : memref<16x128xf32, #tpu.memory_space<vmem>>, vector<8x128xf32>
    %29 = arith.index_cast %c2_i32 : i32 to index
    %c0_17 = arith.constant 0 : index
    %30 = vector.load %arg4[%29, %c0_17] : memref<8x128xf32, #tpu.memory_space<vmem>>, vector<1x128xf32>
    %31 = vector.broadcast %30 : vector<1x128xf32> to vector<8x128xf32>
    %32 = arith.mulf %28, %31 : vector<8x128xf32>
    %33 = arith.addf %25, %32 : vector<8x128xf32>
    %c3_i32 = arith.constant 3 : i32
    %c8_i32_18 = arith.constant 8 : i32
    %34 = arith.subi %c8_i32_18, %c3_i32 : i32
    %35 = arith.index_cast %34 : i32 to index
    %c0_19 = arith.constant 0 : index
    %36 = vector.load %arg8[%35, %c0_19] : memref<16x128xf32, #tpu.memory_space<vmem>>, vector<8x128xf32>
    %37 = arith.index_cast %c3_i32 : i32 to index
    %c0_20 = arith.constant 0 : index
    %38 = vector.load %arg4[%37, %c0_20] : memref<8x128xf32, #tpu.memory_space<vmem>>, vector<1x128xf32>
    %39 = vector.broadcast %38 : vector<1x128xf32> to vector<8x128xf32>
    %40 = arith.mulf %36, %39 : vector<8x128xf32>
    %41 = arith.addf %33, %40 : vector<8x128xf32>
    %c4_i32 = arith.constant 4 : i32
    %c8_i32_21 = arith.constant 8 : i32
    %42 = arith.subi %c8_i32_21, %c4_i32 : i32
    %43 = arith.index_cast %42 : i32 to index
    %c0_22 = arith.constant 0 : index
    %44 = vector.load %arg8[%43, %c0_22] : memref<16x128xf32, #tpu.memory_space<vmem>>, vector<8x128xf32>
    %45 = arith.index_cast %c4_i32 : i32 to index
    %c0_23 = arith.constant 0 : index
    %46 = vector.load %arg4[%45, %c0_23] : memref<8x128xf32, #tpu.memory_space<vmem>>, vector<1x128xf32>
    %47 = vector.broadcast %46 : vector<1x128xf32> to vector<8x128xf32>
    %48 = arith.mulf %44, %47 : vector<8x128xf32>
    %49 = arith.addf %41, %48 : vector<8x128xf32>
    %c5_i32 = arith.constant 5 : i32
    %c8_i32_24 = arith.constant 8 : i32
    %50 = arith.subi %c8_i32_24, %c5_i32 : i32
    %51 = arith.index_cast %50 : i32 to index
    %c0_25 = arith.constant 0 : index
    %52 = vector.load %arg8[%51, %c0_25] : memref<16x128xf32, #tpu.memory_space<vmem>>, vector<8x128xf32>
    %53 = arith.index_cast %c5_i32 : i32 to index
    %c0_26 = arith.constant 0 : index
    %54 = vector.load %arg4[%53, %c0_26] : memref<8x128xf32, #tpu.memory_space<vmem>>, vector<1x128xf32>
    %55 = vector.broadcast %54 : vector<1x128xf32> to vector<8x128xf32>
    %56 = arith.mulf %52, %55 : vector<8x128xf32>
    %57 = arith.addf %49, %56 : vector<8x128xf32>
    %c6_i32 = arith.constant 6 : i32
    %c8_i32_27 = arith.constant 8 : i32
    %58 = arith.subi %c8_i32_27, %c6_i32 : i32
    %59 = arith.index_cast %58 : i32 to index
    %c0_28 = arith.constant 0 : index
    %60 = vector.load %arg8[%59, %c0_28] : memref<16x128xf32, #tpu.memory_space<vmem>>, vector<8x128xf32>
    %61 = arith.index_cast %c6_i32 : i32 to index
    %c0_29 = arith.constant 0 : index
    %62 = vector.load %arg4[%61, %c0_29] : memref<8x128xf32, #tpu.memory_space<vmem>>, vector<1x128xf32>
    %63 = vector.broadcast %62 : vector<1x128xf32> to vector<8x128xf32>
    %64 = arith.mulf %60, %63 : vector<8x128xf32>
    %65 = arith.addf %57, %64 : vector<8x128xf32>
    %c7_i32 = arith.constant 7 : i32
    %c8_i32_30 = arith.constant 8 : i32
    %66 = arith.subi %c8_i32_30, %c7_i32 : i32
    %67 = arith.index_cast %66 : i32 to index
    %c0_31 = arith.constant 0 : index
    %68 = vector.load %arg8[%67, %c0_31] : memref<16x128xf32, #tpu.memory_space<vmem>>, vector<8x128xf32>
    %69 = arith.index_cast %c7_i32 : i32 to index
    %c0_32 = arith.constant 0 : index
    %70 = vector.load %arg4[%69, %c0_32] : memref<8x128xf32, #tpu.memory_space<vmem>>, vector<1x128xf32>
    %71 = vector.broadcast %70 : vector<1x128xf32> to vector<8x128xf32>
    %72 = arith.mulf %68, %71 : vector<8x128xf32>
    %73 = arith.addf %65, %72 : vector<8x128xf32>
    %c8_i32_33 = arith.constant 8 : i32
    %c0_34 = arith.constant 0 : index
    %c0_35 = arith.constant 0 : index
    %74 = vector.load %arg7[%c0_34, %c0_35] : memref<8x128xf32, #tpu.memory_space<vmem>>, vector<8x128xf32>
    tpu.vector_store %arg7[%c0_34, %c0_35], %73 {strides = array<i32>} : memref<8x128xf32, #tpu.memory_space<vmem>>, vector<8x128xf32>,
    return
  }
  func.func @transform_0(%arg0: i32, %arg1: i32, %arg2: memref<1xi32, #tpu.memory_space<smem>>, %arg3: memref<1xi32, #tpu.memory_space<smem>>) -> (i32, i32) {
    %0 = arith.index_cast %arg1 : i32 to index
    %1 = memref.load %arg3[%0] : memref<1xi32, #tpu.memory_space<smem>>
    %c0_i32 = arith.constant 0 : i32
    return %1, %arg0 : i32, i32
  }
  func.func @transform_1(%arg0: i32, %arg1: i32, %arg2: memref<1xi32, #tpu.memory_space<smem>>, %arg3: memref<1xi32, #tpu.memory_space<smem>>) -> (i32, i32) {
    %0 = arith.index_cast %arg1 : i32 to index
    %1 = memref.load %arg2[%0] : memref<1xi32, #tpu.memory_space<smem>>
    %2 = arith.index_cast %arg1 : i32 to index
    %3 = memref.load %arg3[%2] : memref<1xi32, #tpu.memory_space<smem>>
    %4 = arith.subi %1, %3 : i32
    %c0_i32 = arith.constant 0 : i32
    return %4, %arg0 : i32, i32
  }
  func.func @transform_2(%arg0: i32, %arg1: i32, %arg2: memref<1xi32, #tpu.memory_space<smem>>, %arg3: memref<1xi32, #tpu.memory_space<smem>>) -> (i32, i32) {
    %0 = arith.index_cast %arg1 : i32 to index
    %1 = memref.load %arg2[%0] : memref<1xi32, #tpu.memory_space<smem>>
    %2 = arith.index_cast %arg1 : i32 to index
    %3 = memref.load %arg3[%2] : memref<1xi32, #tpu.memory_space<smem>>
    %4 = arith.subi %1, %3 : i32
    %c1_i32 = arith.constant 1 : i32
    %5 = arith.addi %4, %c1_i32 : i32
    %c0_i32 = arith.constant 0 : i32
    return %5, %arg0 : i32, i32
  }
  func.func @transform_3(%arg0: i32, %arg1: i32, %arg2: memref<1xi32, #tpu.memory_space<smem>>, %arg3: memref<1xi32, #tpu.memory_space<smem>>) -> (i32, i32) {
    %0 = arith.index_cast %arg1 : i32 to index
    %1 = memref.load %arg2[%0] : memref<1xi32, #tpu.memory_space<smem>>
    %c0_i32 = arith.constant 0 : i32
    return %1, %arg0 : i32, i32
  }
}

</mosaic_0001>

<llo_original>
// kernel: tpu_custom_call.1
$region0: #{tpu_custom_call.1}
  #allocation0 [shape = 'u32[]', space=smem, size = 0x4, offset = 0x4, fixed_abs, tag = 'smem constant byte address 0x4 - core index']
  #allocation1 [shape = 'u32[144,128]{1,0:T(1,128)}', space=vmem, size = 0x12000, scoped, tag = 'internal scratch']
  #allocation2 [shape = 'f32[16,128]{1,0:T(8,128)}', space=vmem, size = 0x2000, scoped, tag = 'scratch operand']
  #allocation3 [shape = 's32[1]{0}', space=sflag, size = 0x4, scoped, tag = 'scoped memory for tpu_custom_call.1']
  #allocation4 [shape = 's32[1]{0:T(128)S(6)}', space=smem, size = 0x200, scoped, tag = 'prefetched SMEM operand 0']
  #allocation5 [shape = 's32[1]{0:T(128)S(6)}', space=smem, size = 0x200, scoped, tag = 'prefetched SMEM operand 1']
  %s0 = inlined_call_operand.<no memory space> [shape: s32[1], index: 0, kind: input, shape index: {}]
  %s1 = inlined_call_operand.<no memory space> [shape: s32[1], index: 1, kind: input, shape index: {}]
  %s2 = inlined_call_operand.hbm [shape: f32[8,128], index: 2, kind: input, shape index: {}]
  %s3 = inlined_call_operand.hbm [shape: f32[16,128], index: 3, kind: input, shape index: {}]
  %s4 = inlined_call_operand.hbm [shape: f32[16,128], index: 4, kind: input, shape index: {}]
  %s5 = inlined_call_operand.hbm [shape: f32[8,128], index: 5, kind: output, shape index: {}]
  %s6 = sld [smem:[#allocation0]]
  $region38: #{tpu_custom_call.1} parent=0
    _
  %s8 = ssub.s32 1, %s6
  %s9 = scalar_select 0, %s8, %s6
  %10 = sst [smem:[#allocation4]] %s0
  %11 = sst [smem:[#allocation5]] %s1
  $region1: #{tpu_custom_call.1} parent=0
    #allocation6 [shape = 'u8[4096]{0}', space=vmem, size = 0x1000, scoped, tag = 'input window, operand 2, single buffered']
    #allocation7 [shape = 's32[1]{0}', space=sflag, size = 0x4, scoped, tag = 'scoped memory for tpu_custom_call.1']
    #allocation8 [shape = 's32[1]{0}', space=sflag, size = 0x4, scoped, tag = 'scoped memory for tpu_custom_call.1']
    #allocation9 [shape = 'u8[4096]{0}', space=vmem, size = 0x1000, scoped, tag = 'input window, operand 3, single buffered']
    #allocation10 [shape = 's32[1]{0}', space=sflag, size = 0x4, scoped, tag = 'scoped memory for tpu_custom_call.1']
    #allocation11 [shape = 'u8[4096]{0}', space=vmem, size = 0x1000, scoped, tag = 'input window, operand 4, single buffered']
    #allocation12 [shape = 'u8[4096]{0}', space=vmem, size = 0x1000, scoped, tag = 'output window, operand 0, single buffered']
    %12 = vsyncpa [#allocation7], 0
    %13 = vsyncpa [#allocation10], 0
    %14 = vsyncpa [#allocation8], 0
    // Predicated region
    $region2: #{tpu_custom_call.1} parent=1 // pred_check
      _
    $region3: #{tpu_custom_call.1} parent=1 // pred_check_branch
      %16 = sbr.rel (0) target = $region5
    $region4: #{tpu_custom_call.1} parent=1 // pred_region
      %s17 = sld [smem:[#allocation5]]
      %s19 = ssub.s32 128, 128
      %20 = vsyncadd [#allocation7], %s19
      %s21 = smul.addr %s17, 128
      %s22 = scalar_lea.hbm %s2, %s21
      %s24 = sshll.u32 [#allocation6], 4
      %s25 = int_to_ptr.vmem [resolvable:$true] %s24
      %27 = dma.hbm_to_vmem [thread:$0]  %s22, 128, %s25, [#allocation7]
    $region5: #{tpu_custom_call.1} parent=1 // pred_fallthru
      _
    // Predicated region
    $region6: #{tpu_custom_call.1} parent=1 // pred_check
      _
    $region7: #{tpu_custom_call.1} parent=1 // pred_check_branch
      %29 = sbr.rel (0) target = $region9
    $region8: #{tpu_custom_call.1} parent=1 // pred_region
      %s30 = sld [smem:[#allocation4]]
      %s31 = sld [smem:[#allocation5]]
      %s32 = ssub.s32 %s30, %s31
      %s34 = ssub.s32 128, 128
      %35 = vsyncadd [#allocation10], %s34
      %s36 = smul.addr %s32, 128
      %s37 = scalar_lea.hbm %s3, %s36
      %s39 = sshll.u32 [#allocation9], 4
      %s40 = int_to_ptr.vmem [resolvable:$true] %s39
      %42 = dma.hbm_to_vmem [thread:$0]  %s37, 128, %s40, [#allocation10]
    $region9: #{tpu_custom_call.1} parent=1 // pred_fallthru
      _
    // Predicated region
    $region10: #{tpu_custom_call.1} parent=1 // pred_check
      _
    $region11: #{tpu_custom_call.1} parent=1 // pred_check_branch
      %44 = sbr.rel (0) target = $region13
    $region12: #{tpu_custom_call.1} parent=1 // pred_region
      %s45 = sld [smem:[#allocation4]]
      %s46 = sld [smem:[#allocation5]]
      %s47 = ssub.s32 %s45, %s46
      %s48 = sadd.s32 %s47, 1
      %s50 = ssub.s32 128, 128
      %51 = vsyncadd [#allocation10], %s50
      %s52 = smul.addr %s48, 128
      %s53 = scalar_lea.hbm %s4, %s52
      %s55 = sshll.u32 [#allocation11], 4
      %s56 = int_to_ptr.vmem [resolvable:$true] %s55
      %58 = dma.hbm_to_vmem [thread:$0]  %s53, 128, %s56, [#allocation10]
    $region13: #{tpu_custom_call.1} parent=1 // pred_fallthru
      _
    // Predicated region
    $region14: #{tpu_custom_call.1} parent=1 // pred_check
      _
    $region15: #{tpu_custom_call.1} parent=1 // pred_check_branch
      %60 = sbr.rel (0) target = $region17
    $region16: #{tpu_custom_call.1} parent=1 // pred_region
      %61 = dma.done [#allocation7], 128
    $region17: #{tpu_custom_call.1} parent=1 // pred_fallthru
      _
    // Predicated region
    $region18: #{tpu_custom_call.1} parent=1 // pred_check
      _
    $region19: #{tpu_custom_call.1} parent=1 // pred_check_branch
      %63 = sbr.rel (0) target = $region21
    $region20: #{tpu_custom_call.1} parent=1 // pred_region
      %64 = dma.done [#allocation10], 128
    $region21: #{tpu_custom_call.1} parent=1 // pred_fallthru
      _
    // Predicated region
    $region22: #{tpu_custom_call.1} parent=1 // pred_check
      _
    $region23: #{tpu_custom_call.1} parent=1 // pred_check_branch
      %66 = sbr.rel (0) target = $region25
    $region24: #{tpu_custom_call.1} parent=1 // pred_region
      %67 = dma.done [#allocation10], 128
    $region25: #{tpu_custom_call.1} parent=1 // pred_fallthru
      _
    %s68 = sld [smem:[#allocation5]]
    %s69 = sld [smem:[#allocation4]]
    %s70 = sld [smem:[#allocation5]]
    %s71 = ssub.s32 %s69, %s70
    %s72 = sld [smem:[#allocation4]]
    %s73 = sld [smem:[#allocation5]]
    %s74 = ssub.s32 %s72, %s73
    %s75 = sadd.s32 %s74, 1
    %s76 = sld [smem:[#allocation4]]
    %s77 = sld [smem:[#allocation5]]
    %p78 = scmp.eq.s32.totalorder %s77, 0
    // Predicated region
    $region26: #{tpu_custom_call.1} parent=1 // pred_check
      %p79 = pneg %p78
    $region27: #{tpu_custom_call.1} parent=1 // pred_check_branch
      %81 = sbr.rel (%p79) target = $region29
    $region28: #{tpu_custom_call.1} parent=1 // pred_region
      %82 = vst [vmem:[#allocation12] sm:$0xff] 0.0
    $region29: #{tpu_custom_call.1} parent=1 // pred_fallthru
      _
    %v83 = vld [vmem:[#allocation9] sm:$0xff]
    %84 = vst [vmem:[#allocation2] sm:$0xff] %v83
    %v85 = vld [vmem:[#allocation11] sm:$0xff]
    %86 = vst [vmem:[#allocation2 + $0x8] sm:$0xff] %v85
    %v87 = vld [vmem:[#allocation12] sm:$0xff]
    %v88 = vld [vmem:[#allocation2 + $0x8] sm:$0xff]
    %v89 = vld [vmem:[#allocation6] sm:$0x1]
    %v90 = vlaneseq
    %v91 = vshrl.u32 %v90, 7
    %v92 = vsub.s32 0, %v91
    %v93 = vrot.slane %v89, %v92
    %v94 = vmul.f32 %v88, %v93
    %v95 = vadd.f32 %v87, %v94
    %v96 = vld [vmem:[#allocation2 + $0x7] sm:$0xff]
    %v97 = vld [vmem:[#allocation6 + $0x1] sm:$0x1]
    %v98 = vlaneseq
    %v99 = vshrl.u32 %v98, 7
    %v100 = vsub.s32 0, %v99
    %v101 = vrot.slane %v97, %v100
    %v102 = vmul.f32 %v96, %v101
    %v103 = vadd.f32 %v95, %v102
    %v104 = vld [vmem:[#allocation2 + $0x6] sm:$0xff]
    %v105 = vld [vmem:[#allocation6 + $0x2] sm:$0x1]
    %v106 = vlaneseq
    %v107 = vshrl.u32 %v106, 7
    %v108 = vsub.s32 0, %v107
    %v109 = vrot.slane %v105, %v108
    %v110 = vmul.f32 %v104, %v109
    %v111 = vadd.f32 %v103, %v110
    %v112 = vld [vmem:[#allocation2 + $0x5] sm:$0xff]
    %v113 = vld [vmem:[#allocation6 + $0x3] sm:$0x1]
    %v114 = vlaneseq
    %v115 = vshrl.u32 %v114, 7
    %v116 = vsub.s32 0, %v115
    %v117 = vrot.slane %v113, %v116
    %v118 = vmul.f32 %v112, %v117
    %v119 = vadd.f32 %v111, %v118
    %v120 = vld [vmem:[#allocation2 + $0x4] sm:$0xff]
    %v121 = vld [vmem:[#allocation6 + $0x4] sm:$0x1]
    %v122 = vlaneseq
    %v123 = vshrl.u32 %v122, 7
    %v124 = vsub.s32 0, %v123
    %v125 = vrot.slane %v121, %v124
    %v126 = vmul.f32 %v120, %v125
    %v127 = vadd.f32 %v119, %v126
    %v128 = vld [vmem:[#allocation2 + $0x3] sm:$0xff]
    %v129 = vld [vmem:[#allocation6 + $0x5] sm:$0x1]
    %v130 = vlaneseq
    %v131 = vshrl.u32 %v130, 7
    %v132 = vsub.s32 0, %v131
    %v133 = vrot.slane %v129, %v132
    %v134 = vmul.f32 %v128, %v133
    %v135 = vadd.f32 %v127, %v134
    %v136 = vld [vmem:[#allocation2 + $0x2] sm:$0xff]
    %v137 = vld [vmem:[#allocation6 + $0x6] sm:$0x1]
    %v138 = vlaneseq
    %v139 = vshrl.u32 %v138, 7
    %v140 = vsub.s32 0, %v139
    %v141 = vrot.slane %v137, %v140
    %v142 = vmul.f32 %v136, %v141
    %v143 = vadd.f32 %v135, %v142
    %v144 = vld [vmem:[#allocation2 + $0x1] sm:$0xff]
    %v145 = vld [vmem:[#allocation6 + $0x7] sm:$0x1]
    %v146 = vlaneseq
    %v147 = vshrl.u32 %v146, 7
    %v148 = vsub.s32 0, %v147
    %v149 = vrot.slane %v145, %v148
    %v150 = vmul.f32 %v144, %v149
    %v151 = vadd.f32 %v143, %v150
    %152 = vst [vmem:[#allocation12] sm:$0xff] %v151
    // Predicated region
    $region30: #{tpu_custom_call.1} parent=1 // pred_check
      _
    $region31: #{tpu_custom_call.1} parent=1 // pred_check_branch
      %154 = sbr.rel (0) target = $region33
    $region32: #{tpu_custom_call.1} parent=1 // pred_region
      %s155 = sld [smem:[#allocation4]]
      %s157 = ssub.s32 128, 128
      %158 = vsyncadd [#allocation8], %s157
      %s159 = smul.addr %s155, 128
      %s160 = scalar_lea.hbm %s5, %s159
      %s162 = sshll.u32 [#allocation12], 4
      %s163 = int_to_ptr.vmem [resolvable:$true] %s162
      %165 = dma.vmem_to_hbm [thread:$0]  %s163, 128, %s160, [#allocation8]
    $region33: #{tpu_custom_call.1} parent=1 // pred_fallthru
      _
    // Predicated region
    $region34: #{tpu_custom_call.1} parent=1 // pred_check
      _
    $region35: #{tpu_custom_call.1} parent=1 // pred_check_branch
      %167 = sbr.rel (0) target = $region37
    $region36: #{tpu_custom_call.1} parent=1 // pred_region
      %168 = dma.done [#allocation8], 128
    $region37: #{tpu_custom_call.1} parent=1 // pred_fallthru
      _
    %169 = vsyncpa [#allocation7], 1
    %170 = vsyncpa [#allocation10], 1
    %171 = vsyncpa [#allocation8], 1

</llo_original>
